<compile_context>
chip_gen: v7x
topology: tpu7x:2x2x1
jax: 0.10.0
libtpu: 0.0.40
codegen_flags: <defaults>
</compile_context>

<pallas_src>
import functools

import jax
import jax.numpy as jnp
from jax.experimental import pallas as pl
from jax.experimental.pallas import tpu as pltpu


def _tpu_generation():
    """Best-effort TPU generation (5 / 6 / 7); defaults to 6 on uncertainty."""
    try:
        kind = jax.devices()[0].device_kind.lower()
    except Exception:
        return 6
    if "7" in kind:
        return 7
    if "6" in kind:
        return 6
    if "5" in kind:
        return 5
    return 6


def _embed_kernel(x_ref, w1_ref, w2_ref, o_ref, *, chunk, n_chunks, unroll,
                  second_matmul_bf16):
    # x_ref:  (1, C_in,  t_vt)
    # w1_ref: (C_hidden, C_in)    -- PyTorch conv-weight layout (out, in)
    # w2_ref: (C_out,    C_hidden)
    # o_ref:  (1, C_out, t_vt)
    w1 = w1_ref[...]
    w2 = w2_ref[...]
    if second_matmul_bf16:
        w2 = w2.astype(jnp.bfloat16)

    def one_chunk(c):
        j = pl.multiple_of(c * chunk, chunk)
        xc = x_ref[0, :, pl.ds(j, chunk)]                    # (C_in, chunk)
        h = jnp.dot(w1, xc, preferred_element_type=jnp.float32)
        h = jnp.maximum(h, 0.0)                              # (64, chunk)
        if second_matmul_bf16:
            h = h.astype(jnp.bfloat16)
        y = jnp.dot(w2, h, preferred_element_type=jnp.float32)
        y = jnp.maximum(y, 0.0)                              # (C_out, chunk)
        o_ref[0, :, pl.ds(j, chunk)] = y.astype(o_ref.dtype)

    if n_chunks == 1:
        one_chunk(0)
    else:
        def body(c, carry):
            one_chunk(c)
            return carry
        jax.lax.fori_loop(0, n_chunks, body, None, unroll=unroll)


def _pick_vt_tile(vt, target, min_blocks):
    """Divisor-aware VT tile: minimize padded lanes in the last block."""
    nb = max(pl.cdiv(vt, target), min_blocks)
    if nb == 1:
        if vt % 128 == 0 or vt <= 256:
            return vt            # full-extent single block (always legal)
        nb = 2                   # force 128-aligned tiles; keeps chunking clean
    if vt < 128 * nb:
        return vt                # too small to split: single full-extent block
    return 128 * pl.cdiv(vt, 128 * nb)


def embed_forward(x_nchw, w1, w2, *, vt_tile=None, second_matmul_bf16=False):
    """Fused 1x1-conv -> ReLU -> 1x1-conv -> ReLU.

    x_nchw: (N, C_in, V, T) float32
    w1:     (C_hidden, C_in)   first conv weight (PyTorch (out, in) layout)
    w2:     (C_out, C_hidden)  second conv weight
    """
    N, C_in, V, T = x_nchw.shape
    C_hidden, c_in = w1.shape
    C_out, c_hid = w2.shape
    assert c_in == C_in and c_hid == C_hidden

    gen = _tpu_generation()
    if vt_tile is None:
        vt_tile = 4096 if gen == 5 else 8192

    VT = V * T
    x = x_nchw.reshape(N, C_in, VT)      # free (contiguous) reshape, no copy

    # On v7x (2 TCs/chip) keep >=2 grid steps when N==1 so both cores work.
    min_blocks = 2 if (gen >= 7 and N == 1) else 1
    t_vt = _pick_vt_tile(VT, vt_tile, min_blocks)

    # Inner sub-chunk bounds the live (64, chunk) / (C_out, chunk) f32
    # intermediates.  128 on v5e (128-wide MXU, halves vreg pressure),
    # 256 on v6e/v7x (matches the 256-wide MXU).
    chunk_pref = 128 if gen == 5 else 256
    if t_vt % chunk_pref == 0:
        chunk = chunk_pref
    elif t_vt % 128 == 0:
        chunk = 128
    else:
        chunk = t_vt
    n_chunks = t_vt // chunk
    unroll = max(1, min(4, n_chunks))    # bounded unroll: feed MXU, no spills

    grid = (N, pl.cdiv(VT, t_vt))        # partial last VT block is masked

    kernel = functools.partial(
        _embed_kernel, chunk=chunk, n_chunks=n_chunks, unroll=unroll,
        second_matmul_bf16=second_matmul_bf16)

    flops = 2 * N * VT * (C_hidden * C_in + C_out * C_hidden)
    bytes_accessed = 4 * (N * C_in * VT + C_hidden * C_in
                          + C_out * C_hidden + N * C_out * VT)

    out = pl.pallas_call(
        kernel,
        out_shape=jax.ShapeDtypeStruct((N, C_out, VT), x_nchw.dtype),
        grid_spec=pltpu.PrefetchScalarGridSpec(
            num_scalar_prefetch=0,
            grid=grid,
            in_specs=[
                pl.BlockSpec((1, C_in, t_vt), lambda n, j: (n, 0, j)),
                pl.BlockSpec((C_hidden, C_in), lambda n, j: (0, 0)),
                pl.BlockSpec((C_out, C_hidden), lambda n, j: (0, 0)),
            ],
            out_specs=pl.BlockSpec((1, C_out, t_vt), lambda n, j: (n, 0, j)),
        ),
        compiler_params=pltpu.CompilerParams(
            dimension_semantics=("parallel", "parallel")),
        cost_estimate=pl.CostEstimate(
            flops=flops, transcendentals=0, bytes_accessed=bytes_accessed),
    )(x, w1, w2)

    return out.reshape(N, C_out, V, T)   # free reshape back to NCHW


def _reference(x_nchw, w1, w2):
    # Pure-JAX reference of the PyTorch forward (1x1 convs, no bias).
    h = jnp.einsum("ncvt,kc->nkvt", x_nchw, w1)
    h = jnp.maximum(h, 0.0)
    y = jnp.einsum("nkvt,ok->novt", h, w2)
    return jnp.maximum(y, 0.0)


if __name__ == "__main__":
    key = jax.random.PRNGKey(0)
    kx, k1, k2, kx2 = jax.random.split(key, 4)

    # Small shapes consistent with the module: dim=3 in-channels, hidden=64
    # (fixed by the module), dim1=128 out-channels; N=2, V=16 joints, T=8.
    N, C_in, V, T = 2, 3, 16, 8
    C_hidden, C_out = 64, 128

    x = jax.random.normal(kx, (N, C_in, V, T), dtype=jnp.float32)
    # Conv2d 1x1 weights (bias=False), kept in PyTorch's (out, in) layout.
    w1 = (jax.random.normal(k1, (C_hidden, C_in), dtype=jnp.float32)
          * (1.0 / jnp.sqrt(C_in)))
    w2 = (jax.random.normal(k2, (C_out, C_hidden), dtype=jnp.float32)
          * (1.0 / jnp.sqrt(C_hidden)))

    y = jax.block_until_ready(embed_forward(x, w1, w2))
    y_ref = _reference(x, w1, w2)
    assert y.shape == (N, C_out, V, T)
    assert jnp.allclose(y, y_ref, atol=1e-4, rtol=1e-4)

    # Second check: larger V*T (25*56 = 1400, not a 128 multiple) exercising
    # divisor-aware tiling, the inner chunk loop and a masked final VT block.
    V2, T2 = 25, 56
    x2 = jax.random.normal(kx2, (1, C_in, V2, T2), dtype=jnp.float32)
    y2 = jax.block_until_ready(embed_forward(x2, w1, w2))
    y2_ref = _reference(x2, w1, w2)
    assert y2.shape == (1, C_out, V2, T2)
    assert jnp.allclose(y2, y2_ref, atol=1e-4, rtol=1e-4)

    print("KERNEL_OK")
</pallas_src>

<mosaic_0001>
module attributes {stable_mosaic.version = 11 : i64} {
  func.func @_embed_kernel(%arg0: i32, %arg1: i32, %arg2: memref<1x3x128xf32, #tpu.memory_space<vmem>>, %arg3: memref<64x3xf32, #tpu.memory_space<vmem>>, %arg4: memref<128x64xf32, #tpu.memory_space<vmem>>, %arg5: memref<1x128x128xf32, #tpu.memory_space<vmem>>) attributes {dimension_semantics = [#tpu.dimension_semantics<parallel>, #tpu.dimension_semantics<parallel>], iteration_bounds = array<i64: 2, 1>, scalar_prefetch = 0 : i64, scratch_operands = 0 : i64, tpu.core_type = #tpu.core_type<tc>, window_params = [{transform_indices = @transform_0, window_bounds = array<i64: 1, 3, 128>}, {pipeline_mode = #tpu.pipeline_mode<synchronous>, transform_indices = @transform_1, window_bounds = array<i64: 64, 3>}, {pipeline_mode = #tpu.pipeline_mode<synchronous>, transform_indices = @transform_2, window_bounds = array<i64: 128, 64>}, {transform_indices = @transform_3, window_bounds = array<i64: 1, 128, 128>}]} {
    %c0 = arith.constant 0 : index
    %c0_0 = arith.constant 0 : index
    %0 = vector.load %arg3[%c0, %c0_0] : memref<64x3xf32, #tpu.memory_space<vmem>>, vector<64x3xf32>
    %c0_1 = arith.constant 0 : index
    %c0_2 = arith.constant 0 : index
    %1 = vector.load %arg4[%c0_1, %c0_2] : memref<128x64xf32, #tpu.memory_space<vmem>>, vector<128x64xf32>
    %c0_i32 = arith.constant 0 : i32
    %2 = tpu.assume_multiple %c0_i32, 128 : i32
    %c0_3 = arith.constant 0 : index
    %c0_4 = arith.constant 0 : index
    %3 = arith.index_cast %2 : i32 to index
    %4 = vector.load %arg2[%c0_3, %c0_4, %3] : memref<1x3x128xf32, #tpu.memory_space<vmem>>, vector<1x3x128xf32>
    %5 = vector.shape_cast %4 : vector<1x3x128xf32> to vector<3x128xf32>
    %cst = arith.constant dense<0.000000e+00> : vector<64x128xf32>
    %6 = tpu.matmul %0, %5, %cst {dimension_numbers = #tpu.dot_dimension_numbers<[1], [0], [0], [1], [0, 0, 1, 1], [], []>} : vector<64x3xf32>, vector<3x128xf32>, vector<64x128xf32> -> vector<64x128xf32>
    %cst_5 = arith.constant 0.000000e+00 : f32
    %7 = vector.broadcast %cst_5 : f32 to vector<64x128xf32>
    %8 = arith.maximumf %6, %7 : vector<64x128xf32>
    %cst_6 = arith.constant dense<0.000000e+00> : vector<128x128xf32>
    %9 = tpu.matmul %1, %8, %cst_6 {dimension_numbers = #tpu.dot_dimension_numbers<[1], [0], [0], [1], [0, 0, 1, 1], [], []>} : vector<128x64xf32>, vector<64x128xf32>, vector<128x128xf32> -> vector<128x128xf32>
    %cst_7 = arith.constant 0.000000e+00 : f32
    %10 = vector.broadcast %cst_7 : f32 to vector<128x128xf32>
    %11 = arith.maximumf %9, %10 : vector<128x128xf32>
    %c0_8 = arith.constant 0 : index
    %c0_9 = arith.constant 0 : index
    %12 = arith.index_cast %2 : i32 to index
    %13 = vector.load %arg5[%c0_8, %c0_9, %12] : memref<1x128x128xf32, #tpu.memory_space<vmem>>, vector<1x128x128xf32>
    %14 = vector.shape_cast %13 : vector<1x128x128xf32> to vector<128x128xf32>
    %15 = vector.shape_cast %11 : vector<128x128xf32> to vector<1x128x128xf32>
    tpu.vector_store %arg5[%c0_8, %c0_9, %12], %15 {strides = array<i32>} : memref<1x128x128xf32, #tpu.memory_space<vmem>>, vector<1x128x128xf32>,
    return
  }
  func.func @transform_0(%arg0: i32, %arg1: i32) -> (i32, i32, i32) {
    %c0_i32 = arith.constant 0 : i32
    %c0_i32_0 = arith.constant 0 : i32
    return %arg0, %c0_i32, %arg1 : i32, i32, i32
  }
  func.func @transform_1(%arg0: i32, %arg1: i32) -> (i32, i32) {
    %c0_i32 = arith.constant 0 : i32
    %c0_i32_0 = arith.constant 0 : i32
    %c0_i32_1 = arith.constant 0 : i32
    return %c0_i32, %c0_i32_0 : i32, i32
  }
  func.func @transform_2(%arg0: i32, %arg1: i32) -> (i32, i32) {
    %c0_i32 = arith.constant 0 : i32
    %c0_i32_0 = arith.constant 0 : i32
    %c0_i32_1 = arith.constant 0 : i32
    return %c0_i32, %c0_i32_0 : i32, i32
  }
  func.func @transform_3(%arg0: i32, %arg1: i32) -> (i32, i32, i32) {
    %c0_i32 = arith.constant 0 : i32
    %c0_i32_0 = arith.constant 0 : i32
    return %arg0, %c0_i32, %arg1 : i32, i32, i32
  }
}

</mosaic_0001>

<llo_original>
// kernel: tpu_custom_call.1
$region0: #{tpu_custom_call.1}
  #allocation0 [shape = 'u32[]', space=smem, size = 0x4, offset = 0x4, fixed_abs, tag = 'smem constant byte address 0x4 - core index']
  #allocation1 [shape = 'u32[144,128]{1,0:T(1,128)}', space=vmem, size = 0x12000, scoped, tag = 'internal scratch']
  %s0 = inlined_call_operand.vmem [shape: f32[2,3,128], index: 0, kind: input, shape index: {}]
  %s1 = inlined_call_operand.vmem [shape: f32[64,3], index: 1, kind: input, shape index: {}]
  %s2 = inlined_call_operand.vmem [shape: f32[128,64], index: 2, kind: input, shape index: {}]
  %s3 = inlined_call_operand.hbm [shape: f32[2,128,128], index: 3, kind: output, shape index: {}]
  %s4 = sld [smem:[#allocation0]]
  $region45: #{tpu_custom_call.1} parent=0
    _
  %s6 = ssub.s32 1, %s4
  %s7 = scalar_select 0, %s6, %s4
  $region1: #{tpu_custom_call.1} parent=0
    #allocation2 [shape = 'u8[131072]{0}', space=vmem, size = 0x20000, scoped, tag = 'output window, operand 0']
    #allocation3 [shape = 's32[2]{0}', space=sflag, size = 0x8, scoped, tag = 'scoped memory for tpu_custom_call.1']
    %8 = vsyncpa [#allocation3], 0
    %s9 = scalar_lea.sflag [#allocation3], 1
    %10 = vsyncpa %s9, 0
    loop: start=0, step=1, limit=4
    $region2: #{tpu_custom_call.1} parent=1 // loop_pre_header
      _
    $region3: #{tpu_custom_call.1} parent=1 // loop_header
      %s12 = sphi 0, %s16
      %p13 = scmp.ge.s32.totalorder %s12, 4
      %s19 = sphi 0, %s31
      %s20 = sphi 0, %s27
      %s21 = sphi 0, %s19
      %s22 = sphi 0, %s20
      %s23 = sphi 0, %s21
      %s24 = sphi 0, %s22
      %s36 = sphi 0, %s38
      %s39 = sphi 0, %s36
      %s40 = sphi 0, %s39
      %s56 = sphi 0, %s40
      %s60 = sphi 0, %s60
      %s62 = sphi 0, %s60
      %s63 = sphi 0, %s62
      %s77 = sphi 0, %s63
      %s81 = sphi 0, %s81
      %s83 = sphi 0, %s81
      %s84 = sphi 0, %s83
      %s98 = sphi 0, %s84
      %s106 = sphi 0, %s108
      %s109 = sphi 0, %s106
      %s110 = sphi 0, %s109
      %s126 = sphi 0, %s110
    $region4: #{tpu_custom_call.1} parent=1 // loop_header_branch
      %15 = sbr.rel (%p13) target = $region8
    $region5: #{tpu_custom_call.1} parent=1 // loop_body
      %s17 = ssub.s32 %s12, 1
      %s18 = ssub.s32 %s12, 2
      %s25 = sadd.s32 1, %s20
      %p26 = scmp.ge.s32.totalorder %s25, 1
      %s27 = scalar_select %p26, 0, %s25
      %s28 = sadd.s32 1, %s19
      %s29 = scalar_select %p26, %s28, %s19
      %p30 = scmp.ge.s32.totalorder %s29, 2
      %s31 = scalar_select %p30, 0, %s29
      %s32 = ssub.s32 %s19, %s31
      %s33 = ssub.s32 %s20, %s27
      %s34 = sor.u32 %s32, %s33
      %p35 = scmp.eq.s32.totalorder %s34, 0
      %s37 = sadd.s32 %s36, 1
      %s38 = scalar_select %p35, %s36, %s37
      %p41 = pneg %p35
      %p42 = scmp.eq.s32.totalorder %s12, 1
      %p43 = por %p41, %p42
      %p44 = scmp.ne.s32.totalorder %s36, %s39
      %p45 = scmp.eq.s32.totalorder %s12, 0
      %p46 = por %p44, %p45
      %p47 = scmp.ne.s32.totalorder %s36, %s39
      %p48 = scmp.eq.s32.totalorder %s17, 1
      %p49 = por %p47, %p48
      %p50 = scmp.ne.s32.totalorder %s39, %s40
      %p51 = scmp.eq.s32.totalorder %s17, 0
      %p52 = por %p50, %p51
      %p53 = scmp.ne.s32.totalorder %s39, %s40
      %p54 = scmp.eq.s32.totalorder %s18, 1
      %p55 = por %p53, %p54
      %p57 = scmp.ne.s32.totalorder %s40, %s56
      %p58 = scmp.eq.s32.totalorder %s18, 0
      %p59 = por %p57, %p58
      %s61 = sadd.s32 %s60, 1
      %p64 = scmp.eq.s32.totalorder %s12, 1
      %p65 = scmp.ne.s32.totalorder %s60, %s62
      %p66 = scmp.eq.s32.totalorder %s12, 0
      %p67 = por %p65, %p66
      %p68 = scmp.ne.s32.totalorder %s60, %s62
      %p69 = scmp.eq.s32.totalorder %s17, 1
      %p70 = por %p68, %p69
      %p71 = scmp.ne.s32.totalorder %s62, %s63
      %p72 = scmp.eq.s32.totalorder %s17, 0
      %p73 = por %p71, %p72
      %p74 = scmp.ne.s32.totalorder %s62, %s63
      %p75 = scmp.eq.s32.totalorder %s18, 1
      %p76 = por %p74, %p75
      %p78 = scmp.ne.s32.totalorder %s63, %s77
      %p79 = scmp.eq.s32.totalorder %s18, 0
      %p80 = por %p78, %p79
      %s82 = sadd.s32 %s81, 1
      %p85 = scmp.eq.s32.totalorder %s12, 1
      %p86 = scmp.ne.s32.totalorder %s81, %s83
      %p87 = scmp.eq.s32.totalorder %s12, 0
      %p88 = por %p86, %p87
      %p89 = scmp.ne.s32.totalorder %s81, %s83
      %p90 = scmp.eq.s32.totalorder %s17, 1
      %p91 = por %p89, %p90
      %p92 = scmp.ne.s32.totalorder %s83, %s84
      %p93 = scmp.eq.s32.totalorder %s17, 0
      %p94 = por %p92, %p93
      %p95 = scmp.ne.s32.totalorder %s83, %s84
      %p96 = scmp.eq.s32.totalorder %s18, 1
      %p97 = por %p95, %p96
      %p99 = scmp.ne.s32.totalorder %s84, %s98
      %p100 = scmp.eq.s32.totalorder %s18, 0
      %p101 = por %p99, %p100
      %s102 = ssub.s32 %s19, %s31
      %s103 = ssub.s32 %s20, %s27
      %s104 = sor.u32 %s102, %s103
      %p105 = scmp.eq.s32.totalorder %s104, 0
      %s107 = sadd.s32 %s106, 1
      %s108 = scalar_select %p105, %s106, %s107
      %p111 = pneg %p105
      %p112 = scmp.eq.s32.totalorder %s12, 1
      %p113 = por %p111, %p112
      %p114 = scmp.ne.s32.totalorder %s106, %s109
      %p115 = scmp.eq.s32.totalorder %s12, 0
      %p116 = por %p114, %p115
      %p117 = scmp.ne.s32.totalorder %s106, %s109
      %p118 = scmp.eq.s32.totalorder %s17, 1
      %p119 = por %p117, %p118
      %p120 = scmp.ne.s32.totalorder %s109, %s110
      %p121 = scmp.eq.s32.totalorder %s17, 0
      %p122 = por %p120, %p121
      %p123 = scmp.ne.s32.totalorder %s109, %s110
      %p124 = scmp.eq.s32.totalorder %s18, 1
      %p125 = por %p123, %p124
      %p127 = scmp.ne.s32.totalorder %s110, %s126
      %p128 = scmp.eq.s32.totalorder %s18, 0
      %p129 = por %p127, %p128
      %p130 = scmp.le.s32.totalorder 1, %s12
      %p131 = scmp.lt.s32.totalorder %s12, 3
      %p132 = pnand %p130, %p131
      %p133 = pneg %p132
      // Predicated region
      $region9: #{tpu_custom_call.1} parent=5 // pred_check
        _
      $region10: #{tpu_custom_call.1} parent=5 // pred_check_branch
        %135 = sbr.rel (%p132) target = $region12
      $region11: #{tpu_custom_call.1} parent=5 // pred_region
        %s136 = ssub.s32 %s12, 1
        // Predicated region
        $region13: #{tpu_custom_call.1} parent=11 // pred_check
          %p137 = pneg %p73
        $region14: #{tpu_custom_call.1} parent=11 // pred_check_branch
          %139 = sbr.rel (%p137) target = $region16
        $region15: #{tpu_custom_call.1} parent=11 // pred_region
          _
        $region16: #{tpu_custom_call.1} parent=11 // pred_fallthru
          _
        // Predicated region
        $region17: #{tpu_custom_call.1} parent=11 // pred_check
          %p140 = pneg %p94
        $region18: #{tpu_custom_call.1} parent=11 // pred_check_branch
          %142 = sbr.rel (%p140) target = $region20
        $region19: #{tpu_custom_call.1} parent=11 // pred_region
          _
        $region20: #{tpu_custom_call.1} parent=11 // pred_fallthru
          _
      $region12: #{tpu_custom_call.1} parent=5 // pred_fallthru
        _
      %p143 = scmp.lt.s32.totalorder %s12, 2
      // Predicated region
      $region21: #{tpu_custom_call.1} parent=5 // pred_check
        %p144 = pneg %p143
      $region22: #{tpu_custom_call.1} parent=5 // pred_check_branch
        %146 = sbr.rel (%p144) target = $region24
      $region23: #{tpu_custom_call.1} parent=5 // pred_region
        // Predicated region
        $region25: #{tpu_custom_call.1} parent=23 // pred_check
          %p147 = pneg %p46
        $region26: #{tpu_custom_call.1} parent=23 // pred_check_branch
          %149 = sbr.rel (%p147) target = $region28
        $region27: #{tpu_custom_call.1} parent=23 // pred_region
          %p150 = scmp.lt.s32.totalorder %s19, 1
          %s151 = scalar_select %p150, %s19, 1
          %p152 = scmp.lt.s32.totalorder %s20, 0
          %s153 = scalar_select %p152, %s20, 0
          %s154 = sadd.s32 %s153, %s151
          %s155 = smul.addr %s154, 4
          %s156 = scalar_lea.vmem %s0, %s155
        $region28: #{tpu_custom_call.1} parent=23 // pred_fallthru
          _
      $region24: #{tpu_custom_call.1} parent=5 // pred_fallthru
        _
      %p157 = scmp.le.s32.totalorder 1, %s12
      %p158 = scmp.lt.s32.totalorder %s12, 3
      %p159 = pnand %p157, %p158
      %p160 = pneg %p159
      // Predicated region
      $region29: #{tpu_custom_call.1} parent=5 // pred_check
        _
      $region30: #{tpu_custom_call.1} parent=5 // pred_check_branch
        %162 = sbr.rel (%p159) target = $region32
      $region31: #{tpu_custom_call.1} parent=5 // pred_region
        %s163 = ssub.s32 %s12, 1
        %p164 = scmp.lt.s32.totalorder %s21, 1
        %s165 = scalar_select %p164, %s21, 1
        %p166 = scmp.lt.s32.totalorder %s22, 0
        %s167 = scalar_select %p166, %s22, 0
        %s168 = sadd.s32 %s167, %s165
        %s169 = smul.addr %s168, 4
        %s170 = scalar_lea.vmem %s0, %s169
        %p171 = pneg %p52
        %p172 = pneg %p49
        %p173 = pneg %p73
        %p174 = pneg %p70
        %p175 = pneg %p94
        %p176 = pneg %p91
        %p177 = pneg %p122
        %p178 = pneg %p119
        %s179 = sand.u32 %s109, 1
        %s180 = scalar_lea.sflag [#allocation3], %s179
        %s181 = sand.u32 %s109, 1
        %s182 = smul.addr %s181, 128
        %s183 = scalar_lea.vmem [#allocation2], %s182
        %p184 = scmp.lt.s32.totalorder %s21, 1
        %s185 = scalar_select %p184, %s21, 1
        %p186 = scmp.lt.s32.totalorder %s22, 0
        %s187 = scalar_select %p186, %s22, 0
        %s188 = sadd.s32 %s187, %s185
        %s189 = smul.addr %s188, 4
        %s190 = scalar_lea.vmem %s0, %s189
        %v191 = vld [vmem:[%s1] sm:$0xff]
        %v192 = vld [vmem:[%s1 + $0x8] sm:$0xff]
        %v193 = vld [vmem:[%s1 + $0x10] sm:$0xff]
        %v194 = vld [vmem:[%s1 + $0x18] sm:$0xff]
        %v195 = vld [vmem:[%s1 + $0x20] sm:$0xff]
        %v196 = vld [vmem:[%s1 + $0x28] sm:$0xff]
        %v197 = vld [vmem:[%s1 + $0x30] sm:$0xff]
        %v198 = vld [vmem:[%s1 + $0x38] sm:$0xff]
        %v199 = vld [vmem:[%s2] sm:$0xff]
        %v200 = vld [vmem:[%s2 + $0x8] sm:$0xff]
        %v201 = vld [vmem:[%s2 + $0x10] sm:$0xff]
        %v202 = vld [vmem:[%s2 + $0x18] sm:$0xff]
        %v203 = vld [vmem:[%s2 + $0x20] sm:$0xff]
        %v204 = vld [vmem:[%s2 + $0x28] sm:$0xff]
        %v205 = vld [vmem:[%s2 + $0x30] sm:$0xff]
        %v206 = vld [vmem:[%s2 + $0x38] sm:$0xff]
        %v207 = vld [vmem:[%s2 + $0x40] sm:$0xff]
        %v208 = vld [vmem:[%s2 + $0x48] sm:$0xff]
        %v209 = vld [vmem:[%s2 + $0x50] sm:$0xff]
        %v210 = vld [vmem:[%s2 + $0x58] sm:$0xff]
        %v211 = vld [vmem:[%s2 + $0x60] sm:$0xff]
        %v212 = vld [vmem:[%s2 + $0x68] sm:$0xff]
        %v213 = vld [vmem:[%s2 + $0x70] sm:$0xff]
        %v214 = vld [vmem:[%s2 + $0x78] sm:$0xff]
        %v215 = vld [vmem:[%s190] sm:$0x7]
        %vm216 = vcmask 23552
        %v218 = vsel %vm216, %v191, 0
        %v221 = vsel %vm216, %v192, 0
        %v224 = vsel %vm216, %v193, 0
        %v227 = vsel %vm216, %v194, 0
        %v230 = vsel %vm216, %v195, 0
        %v233 = vsel %vm216, %v196, 0
        %v236 = vsel %vm216, %v197, 0
        %v239 = vsel %vm216, %v198, 0
        %vm241 = vcmask 1042432
        %v243 = vsel %vm241, %v215, 0
        %245 = vmatprep.subr.mxu0 0.0
        %246 = vmatpush1.msra.mxu0 %v243
        %247 = vmatprep.subr.mxu0 0.0
        %248 = vmatpush1.msra.mxu0 0.0
        %249 = vmatprep.subr.mxu0 0.0
        %250 = vmatpush1.msra.mxu0 0.0
        %251 = vmatprep.subr.mxu0 0.0
        %252 = vmatpush1.msra.mxu0 0.0
        %253 = vmatprep.subr.mxu0 0.0
        %254 = vmatpush1.msra.mxu0 0.0
        %255 = vmatprep.subr.mxu0 0.0
        %256 = vmatpush1.msra.mxu0 0.0
        %257 = vmatprep.subr.mxu0 0.0
        %258 = vmatpush1.msra.mxu0 0.0
        %259 = vmatprep.subr.mxu0 0.0
        %260 = vmatpush1.msra.mxu0 0.0
        %261 = vmatprep.subr.mxu0 0.0
        %262 = vmatpush1.msra.mxu0 0.0
        %263 = vmatprep.subr.mxu0 0.0
        %264 = vmatpush1.msra.mxu0 0.0
        %265 = vmatprep.subr.mxu0 0.0
        %266 = vmatpush1.msra.mxu0 0.0
        %267 = vmatprep.subr.mxu0 0.0
        %268 = vmatpush1.msra.mxu0 0.0
        %269 = vmatprep.subr.mxu0 0.0
        %270 = vmatpush1.msra.mxu0 0.0
        %271 = vmatprep.subr.mxu0 0.0
        %272 = vmatpush1.msra.mxu0 0.0
        %273 = vmatprep.subr.mxu0 0.0
        %274 = vmatpush1.msra.mxu0 0.0
        %275 = vmatprep.subr.mxu0 0.0
        %276 = vmatpush1.msra.mxu0 0.0
        %277 = vmatprep.subr.mxu0 0.0
        %278 = vmatpush1.msra.mxu0 0.0
        %279 = vmatprep.subr.mxu0 0.0
        %280 = vmatpush1.msra.mxu0 0.0
        %281 = vmatprep.subr.mxu0 0.0
        %282 = vmatpush1.msra.mxu0 0.0
        %283 = vmatprep.subr.mxu0 0.0
        %284 = vmatpush1.msra.mxu0 0.0
        %285 = vmatprep.subr.mxu0 0.0
        %286 = vmatpush1.msra.mxu0 0.0
        %287 = vmatprep.subr.mxu0 0.0
        %288 = vmatpush1.msra.mxu0 0.0
        %289 = vmatprep.subr.mxu0 0.0
        %290 = vmatpush1.msra.mxu0 0.0
        %291 = vmatprep.subr.mxu0 0.0
        %292 = vmatpush1.msra.mxu0 0.0
        %293 = vmatprep.subr.mxu0 0.0
        %294 = vmatpush1.msra.mxu0 0.0
        %295 = vmatprep.subr.mxu0 0.0
        %296 = vmatpush1.msra.mxu0 0.0
        %297 = vmatprep.subr.mxu0 0.0
        %298 = vmatpush1.msra.mxu0 0.0
        %299 = vmatprep.subr.mxu0 0.0
        %300 = vmatpush1.msra.mxu0 0.0
        %301 = vmatprep.subr.mxu0 0.0
        %302 = vmatpush1.msra.mxu0 0.0
        %303 = vmatprep.subr.mxu0 0.0
        %304 = vmatpush1.msra.mxu0 0.0
        %305 = vmatprep.subr.mxu0 0.0
        %306 = vmatpush1.msra.mxu0 0.0
        %307 = vmatprep.subr.mxu0 0.0
        %308 = vmatpush1.msra.mxu0 0.0
        %309 = vmatprep.mubr.f32.mxu0 0.0
        %310 = vmatmul.mubr.f32.gmra.mrb[0].mxu0 %v218
        %v311 = vpop.f32.mrb[0].mxu0
        %v312 = vadd.f32 0.0, %v311
        %v313 = vpop.f32.mrb[0].mxu0
        %314 = vmatprep.mubr.f32.mxu0 0.0
        %315 = vmatmul.mubr.f32.gmra.mrb[0].mxu0 %v221
        %v316 = vpop.f32.mrb[0].mxu0
        %v317 = vadd.f32 0.0, %v316
        %v318 = vpop.f32.mrb[0].mxu0
        %319 = vmatprep.mubr.f32.mxu0 0.0
        %320 = vmatmul.mubr.f32.gmra.mrb[0].mxu0 %v224
        %v321 = vpop.f32.mrb[0].mxu0
        %v322 = vadd.f32 0.0, %v321
        %v323 = vpop.f32.mrb[0].mxu0
        %324 = vmatprep.mubr.f32.mxu0 0.0
        %325 = vmatmul.mubr.f32.gmra.mrb[0].mxu0 %v227
        %v326 = vpop.f32.mrb[0].mxu0
        %v327 = vadd.f32 0.0, %v326
        %v328 = vpop.f32.mrb[0].mxu0
        %329 = vmatprep.mubr.f32.mxu0 0.0
        %330 = vmatmul.mubr.f32.gmra.mrb[0].mxu0 %v230
        %v331 = vpop.f32.mrb[0].mxu0
        %v332 = vadd.f32 0.0, %v331
        %v333 = vpop.f32.mrb[0].mxu0
        %334 = vmatprep.mubr.f32.mxu0 0.0
        %335 = vmatmul.mubr.f32.gmra.mrb[0].mxu0 %v233
        %v336 = vpop.f32.mrb[0].mxu0
        %v337 = vadd.f32 0.0, %v336
        %v338 = vpop.f32.mrb[0].mxu0
        %339 = vmatprep.mubr.f32.mxu0 0.0
        %340 = vmatmul.mubr.f32.gmra.mrb[0].mxu0 %v236
        %v341 = vpop.f32.mrb[0].mxu0
        %v342 = vadd.f32 0.0, %v341
        %v343 = vpop.f32.mrb[0].mxu0
        %344 = vmatprep.mubr.f32.mxu0 0.0
        %345 = vmatmul.mubr.f32.gmra.mrb[0].mxu0 %v239
        %v346 = vpop.f32.mrb[0].mxu0
        %v347 = vadd.f32 0.0, %v346
        %v348 = vpop.f32.mrb[0].mxu0
        %349 = vdwg.mxu0
        %v350 = vmax.f32 %v312, 0.0
        %v351 = vmax.f32 %v317, 0.0
        %v352 = vmax.f32 %v322, 0.0
        %v353 = vmax.f32 %v327, 0.0
        %v354 = vmax.f32 %v332, 0.0
        %v355 = vmax.f32 %v337, 0.0
        %v356 = vmax.f32 %v342, 0.0
        %v357 = vmax.f32 %v347, 0.0
        %vm358 = vcmask 523264
        %v360 = vsel %vm358, %v199, 0
        %v363 = vsel %vm358, %v200, 0
        %v366 = vsel %vm358, %v201, 0
        %v369 = vsel %vm358, %v202, 0
        %v372 = vsel %vm358, %v203, 0
        %v375 = vsel %vm358, %v204, 0
        %v378 = vsel %vm358, %v205, 0
        %v381 = vsel %vm358, %v206, 0
        %v384 = vsel %vm358, %v207, 0
        %v387 = vsel %vm358, %v208, 0
        %v390 = vsel %vm358, %v209, 0
        %v393 = vsel %vm358, %v210, 0
        %v396 = vsel %vm358, %v211, 0
        %v399 = vsel %vm358, %v212, 0
        %v402 = vsel %vm358, %v213, 0
        %v405 = vsel %vm358, %v214, 0
        %407 = vmatprep.subr.mxu0 0.0
        %408 = vmatpush1.msra.mxu0 %v350
        %409 = vmatprep.subr.mxu0 0.0
        %410 = vmatpush1.msra.mxu0 %v351
        %411 = vmatprep.subr.mxu0 0.0
        %412 = vmatpush1.msra.mxu0 %v352
        %413 = vmatprep.subr.mxu0 0.0
        %414 = vmatpush1.msra.mxu0 %v353
        %415 = vmatprep.subr.mxu0 0.0
        %416 = vmatpush1.msra.mxu0 %v354
        %417 = vmatprep.subr.mxu0 0.0
        %418 = vmatpush1.msra.mxu0 %v355
        %419 = vmatprep.subr.mxu0 0.0
        %420 = vmatpush1.msra.mxu0 %v356
        %421 = vmatprep.subr.mxu0 0.0
        %422 = vmatpush1.msra.mxu0 %v357
        %423 = vmatprep.subr.mxu0 0.0
        %424 = vmatpush1.msra.mxu0 0.0
        %425 = vmatprep.subr.mxu0 0.0
        %426 = vmatpush1.msra.mxu0 0.0
        %427 = vmatprep.subr.mxu0 0.0
        %428 = vmatpush1.msra.mxu0 0.0
        %429 = vmatprep.subr.mxu0 0.0
        %430 = vmatpush1.msra.mxu0 0.0
        %431 = vmatprep.subr.mxu0 0.0
        %432 = vmatpush1.msra.mxu0 0.0
        %433 = vmatprep.subr.mxu0 0.0
        %434 = vmatpush1.msra.mxu0 0.0
        %435 = vmatprep.subr.mxu0 0.0
        %436 = vmatpush1.msra.mxu0 0.0
        %437 = vmatprep.subr.mxu0 0.0
        %438 = vmatpush1.msra.mxu0 0.0
        %439 = vmatprep.subr.mxu0 0.0
        %440 = vmatpush1.msra.mxu0 0.0
        %441 = vmatprep.subr.mxu0 0.0
        %442 = vmatpush1.msra.mxu0 0.0
        %443 = vmatprep.subr.mxu0 0.0
        %444 = vmatpush1.msra.mxu0 0.0
        %445 = vmatprep.subr.mxu0 0.0
        %446 = vmatpush1.msra.mxu0 0.0
        %447 = vmatprep.subr.mxu0 0.0
        %448 = vmatpush1.msra.mxu0 0.0
        %449 = vmatprep.subr.mxu0 0.0
        %450 = vmatpush1.msra.mxu0 0.0
        %451 = vmatprep.subr.mxu0 0.0
        %452 = vmatpush1.msra.mxu0 0.0
        %453 = vmatprep.subr.mxu0 0.0
        %454 = vmatpush1.msra.mxu0 0.0
        %455 = vmatprep.subr.mxu0 0.0
        %456 = vmatpush1.msra.mxu0 0.0
        %457 = vmatprep.subr.mxu0 0.0
        %458 = vmatpush1.msra.mxu0 0.0
        %459 = vmatprep.subr.mxu0 0.0
        %460 = vmatpush1.msra.mxu0 0.0
        %461 = vmatprep.subr.mxu0 0.0
        %462 = vmatpush1.msra.mxu0 0.0
        %463 = vmatprep.subr.mxu0 0.0
        %464 = vmatpush1.msra.mxu0 0.0
        %465 = vmatprep.subr.mxu0 0.0
        %466 = vmatpush1.msra.mxu0 0.0
        %467 = vmatprep.subr.mxu0 0.0
        %468 = vmatpush1.msra.mxu0 0.0
        %469 = vmatprep.subr.mxu0 0.0
        %470 = vmatpush1.msra.mxu0 0.0
        %471 = vmatprep.mubr.f32.mxu0 0.0
        %472 = vmatmul.mubr.f32.gmra.mrb[0].mxu0 %v360
        %v473 = vpop.f32.mrb[0].mxu0
        %v474 = vadd.f32 0.0, %v473
        %v475 = vpop.f32.mrb[0].mxu0
        %476 = vmatprep.mubr.f32.mxu0 0.0
        %477 = vmatmul.mubr.f32.gmra.mrb[0].mxu0 %v363
        %v478 = vpop.f32.mrb[0].mxu0
        %v479 = vadd.f32 0.0, %v478
        %v480 = vpop.f32.mrb[0].mxu0
        %481 = vmatprep.mubr.f32.mxu0 0.0
        %482 = vmatmul.mubr.f32.gmra.mrb[0].mxu0 %v366
        %v483 = vpop.f32.mrb[0].mxu0
        %v484 = vadd.f32 0.0, %v483
        %v485 = vpop.f32.mrb[0].mxu0
        %486 = vmatprep.mubr.f32.mxu0 0.0
        %487 = vmatmul.mubr.f32.gmra.mrb[0].mxu0 %v369
        %v488 = vpop.f32.mrb[0].mxu0
        %v489 = vadd.f32 0.0, %v488
        %v490 = vpop.f32.mrb[0].mxu0
        %491 = vmatprep.mubr.f32.mxu0 0.0
        %492 = vmatmul.mubr.f32.gmra.mrb[0].mxu0 %v372
        %v493 = vpop.f32.mrb[0].mxu0
        %v494 = vadd.f32 0.0, %v493
        %v495 = vpop.f32.mrb[0].mxu0
        %496 = vmatprep.mubr.f32.mxu0 0.0
        %497 = vmatmul.mubr.f32.gmra.mrb[0].mxu0 %v375
        %v498 = vpop.f32.mrb[0].mxu0
        %v499 = vadd.f32 0.0, %v498
        %v500 = vpop.f32.mrb[0].mxu0
        %501 = vmatprep.mubr.f32.mxu0 0.0
        %502 = vmatmul.mubr.f32.gmra.mrb[0].mxu0 %v378
        %v503 = vpop.f32.mrb[0].mxu0
        %v504 = vadd.f32 0.0, %v503
        %v505 = vpop.f32.mrb[0].mxu0
        %506 = vmatprep.mubr.f32.mxu0 0.0
        %507 = vmatmul.mubr.f32.gmra.mrb[0].mxu0 %v381
        %v508 = vpop.f32.mrb[0].mxu0
        %v509 = vadd.f32 0.0, %v508
        %v510 = vpop.f32.mrb[0].mxu0
        %511 = vmatprep.mubr.f32.mxu0 0.0
        %512 = vmatmul.mubr.f32.gmra.mrb[0].mxu0 %v384
        %v513 = vpop.f32.mrb[0].mxu0
        %v514 = vadd.f32 0.0, %v513
        %v515 = vpop.f32.mrb[0].mxu0
        %516 = vmatprep.mubr.f32.mxu0 0.0
        %517 = vmatmul.mubr.f32.gmra.mrb[0].mxu0 %v387
        %v518 = vpop.f32.mrb[0].mxu0
        %v519 = vadd.f32 0.0, %v518
        %v520 = vpop.f32.mrb[0].mxu0
        %521 = vmatprep.mubr.f32.mxu0 0.0
        %522 = vmatmul.mubr.f32.gmra.mrb[0].mxu0 %v390
        %v523 = vpop.f32.mrb[0].mxu0
        %v524 = vadd.f32 0.0, %v523
        %v525 = vpop.f32.mrb[0].mxu0
        %526 = vmatprep.mubr.f32.mxu0 0.0
        %527 = vmatmul.mubr.f32.gmra.mrb[0].mxu0 %v393
        %v528 = vpop.f32.mrb[0].mxu0
        %v529 = vadd.f32 0.0, %v528
        %v530 = vpop.f32.mrb[0].mxu0
        %531 = vmatprep.mubr.f32.mxu0 0.0
        %532 = vmatmul.mubr.f32.gmra.mrb[0].mxu0 %v396
        %v533 = vpop.f32.mrb[0].mxu0
        %v534 = vadd.f32 0.0, %v533
        %v535 = vpop.f32.mrb[0].mxu0
        %536 = vmatprep.mubr.f32.mxu0 0.0
        %537 = vmatmul.mubr.f32.gmra.mrb[0].mxu0 %v399
        %v538 = vpop.f32.mrb[0].mxu0
        %v539 = vadd.f32 0.0, %v538
        %v540 = vpop.f32.mrb[0].mxu0
        %541 = vmatprep.mubr.f32.mxu0 0.0
        %542 = vmatmul.mubr.f32.gmra.mrb[0].mxu0 %v402
        %v543 = vpop.f32.mrb[0].mxu0
        %v544 = vadd.f32 0.0, %v543
        %v545 = vpop.f32.mrb[0].mxu0
        %546 = vmatprep.mubr.f32.mxu0 0.0
        %547 = vmatmul.mubr.f32.gmra.mrb[0].mxu0 %v405
        %v548 = vpop.f32.mrb[0].mxu0
        %v549 = vadd.f32 0.0, %v548
        %v550 = vpop.f32.mrb[0].mxu0
        %551 = vdwg.mxu0
        %v552 = vmax.f32 %v474, 0.0
        %v553 = vmax.f32 %v479, 0.0
        %v554 = vmax.f32 %v484, 0.0
        %v555 = vmax.f32 %v489, 0.0
        %v556 = vmax.f32 %v494, 0.0
        %v557 = vmax.f32 %v499, 0.0
        %v558 = vmax.f32 %v504, 0.0
        %v559 = vmax.f32 %v509, 0.0
        %v560 = vmax.f32 %v514, 0.0
        %v561 = vmax.f32 %v519, 0.0
        %v562 = vmax.f32 %v524, 0.0
        %v563 = vmax.f32 %v529, 0.0
        %v564 = vmax.f32 %v534, 0.0
        %v565 = vmax.f32 %v539, 0.0
        %v566 = vmax.f32 %v544, 0.0
        %v567 = vmax.f32 %v549, 0.0
        %568 = vst [vmem:[%s183] sm:$0xff] %v552
        %569 = vst [vmem:[%s183 + $0x8] sm:$0xff] %v553
        %570 = vst [vmem:[%s183 + $0x10] sm:$0xff] %v554
        %571 = vst [vmem:[%s183 + $0x18] sm:$0xff] %v555
        %572 = vst [vmem:[%s183 + $0x20] sm:$0xff] %v556
        %573 = vst [vmem:[%s183 + $0x28] sm:$0xff] %v557
        %574 = vst [vmem:[%s183 + $0x30] sm:$0xff] %v558
        %575 = vst [vmem:[%s183 + $0x38] sm:$0xff] %v559
        %576 = vst [vmem:[%s183 + $0x40] sm:$0xff] %v560
        %577 = vst [vmem:[%s183 + $0x48] sm:$0xff] %v561
        %578 = vst [vmem:[%s183 + $0x50] sm:$0xff] %v562
        %579 = vst [vmem:[%s183 + $0x58] sm:$0xff] %v563
        %580 = vst [vmem:[%s183 + $0x60] sm:$0xff] %v564
        %581 = vst [vmem:[%s183 + $0x68] sm:$0xff] %v565
        %582 = vst [vmem:[%s183 + $0x70] sm:$0xff] %v566
        %583 = vst [vmem:[%s183 + $0x78] sm:$0xff] %v567
        %s584 = sand.u32 %s109, 1
        %s585 = scalar_lea.sflag [#allocation3], %s584
        %s586 = sand.u32 %s109, 1
        %s587 = smul.addr %s586, 128
        %s588 = scalar_lea.vmem [#allocation2], %s587
        // Predicated region
        $region33: #{tpu_custom_call.1} parent=31 // pred_check
          %p589 = pneg %p119
        $region34: #{tpu_custom_call.1} parent=31 // pred_check_branch
          %591 = sbr.rel (%p589) target = $region36
        $region35: #{tpu_custom_call.1} parent=31 // pred_region
          %s593 = ssub.s32 2048, 2048
          %594 = vsyncadd %s585, %s593
          %s595 = smul.addr %s21, 16
          %s596 = sadd.s32 %s22, %s595
          %s597 = smul.addr %s596, 128
          %s598 = scalar_lea.hbm %s3, %s597
          %s599 = sshll.u32 %s588, 4
          %s600 = int_to_ptr.vmem [resolvable:$true] %s599
          %605 = dma.vmem_to_hbm [thread:$0]  %s600, 2048, %s598, %s585, 128, 128, 8
        $region36: #{tpu_custom_call.1} parent=31 // pred_fallthru
          _
      $region32: #{tpu_custom_call.1} parent=5 // pred_fallthru
        _
      %p606 = scmp.le.s32.totalorder 2, %s12
      // Predicated region
      $region37: #{tpu_custom_call.1} parent=5 // pred_check
        %p607 = pneg %p606
      $region38: #{tpu_custom_call.1} parent=5 // pred_check_branch
        %609 = sbr.rel (%p607) target = $region40
      $region39: #{tpu_custom_call.1} parent=5 // pred_region
        %s610 = ssub.s32 %s12, 2
        // Predicated region
        $region41: #{tpu_custom_call.1} parent=39 // pred_check
          %p611 = pneg %p125
        $region42: #{tpu_custom_call.1} parent=39 // pred_check_branch
          %613 = sbr.rel (%p611) target = $region44
        $region43: #{tpu_custom_call.1} parent=39 // pred_region
          %s614 = sand.u32 %s110, 1
          %s615 = scalar_lea.sflag [#allocation3], %s614
          %s616 = sand.u32 %s110, 1
          %s617 = smul.addr %s616, 128
          %s618 = scalar_lea.vmem [#allocation2], %s617
          %619 = dma.done %s615, 2048
        $region44: #{tpu_custom_call.1} parent=39 // pred_fallthru
          _
      $region40: #{tpu_custom_call.1} parent=5 // pred_fallthru
        _
    $region6: #{tpu_custom_call.1} parent=1 // loop_footer
      %s16 = sadd.s32 1, %s12
    $region7: #{tpu_custom_call.1} parent=1 // loop_footer_branch
      %11 = sbr.rel target = $region3
    $region8: #{tpu_custom_call.1} parent=1 // loop_exit
      _
    %620 = vsyncpa [#allocation3], 1
    %s621 = scalar_lea.sflag [#allocation3], 1
    %622 = vsyncpa %s621, 1

</llo_original>
